<compile_context>
chip_gen: v7x
topology: tpu7x:2x2x1
jax: 0.10.0
libtpu: 0.0.40
codegen_flags: <defaults>
</compile_context>

<pallas_src>
import functools
import math

import jax
import jax.numpy as jnp
import numpy as np
from jax import lax
from jax.experimental import pallas as pl
from jax.experimental.pallas import tpu as pltpu

_INV_LN2 = 1.0 / math.log(2.0)


def _em_kernel(x_ref, out_ref, acc_ref, *, ts, hw_total, n_tiles, n_chunks,
               inner_steps, eps, apply_nonlin, use_mxu):
    """One grid step processes a (1, C, ts) tile of logits.

    x_ref:   (1, C, ts)   logits block (native dtype; cast to f32 in vregs)
    out_ref: (1, 1, 1, 1) per-(batch-row, chunk) partial sum; the -1/ln2 scale is
                          applied once on the last inner step.
    acc_ref: (1, ts)      f32 class-reduced accumulator, persists across inner axis
    """
    c = pl.program_id(1)
    s = pl.program_id(2)

    @pl.when(s == 0)
    def _():
        acc_ref[...] = jnp.zeros_like(acc_ref)

    x = x_ref[0].astype(jnp.float32)                          # (C, ts)
    C = x.shape[0]
    ln_eps = jnp.float32(math.log(eps))

    if use_mxu:
        # Large C: offload the class-axis reductions to the otherwise-idle MXU.
        ones_row = jnp.ones((1, C), jnp.float32)

        def class_sum(t):
            return jnp.dot(ones_row, t, preferred_element_type=jnp.float32)
    else:
        def class_sum(t):
            return jnp.sum(t, axis=0, keepdims=True)

    if apply_nonlin:
        # Numerically-stable softmax over the class (sublane) axis; entropy kept in
        # ln-space:  -p*log2(clamp(p,eps)) == -(1/ln2) * p * max(ln p, ln eps).
        m = jnp.max(x, axis=0, keepdims=True)                 # (1, ts)
        ex = jnp.exp(x - m)                                    # (C, ts)  EUP
        se = class_sum(ex)                                     # (1, ts)
        lse = m + jnp.log(se)                                  # (1, ts)
        p = ex * (1.0 / se)                                    # exact softmax
        em = p * jnp.maximum(x - lse, ln_eps)                  # p * ln(clamp(p, eps))
    else:
        em = x * jnp.log(jnp.maximum(x, jnp.float32(eps)))     # x * ln(clamp(x, eps))

    if hw_total % ts != 0:
        # Only the globally-last tile is partial; keep the mask off the steady path.
        is_last = jnp.logical_and(c == n_chunks - 1, s == inner_steps - 1)

        @pl.when(is_last)
        def _():
            col = lax.broadcasted_iota(jnp.int32, (1, ts), 1) + (n_tiles - 1) * ts
            em_m = jnp.where(col < hw_total, em, 0.0)          # mask BEFORE the reduce
            acc_ref[...] += class_sum(em_m)

        @pl.when(jnp.logical_not(is_last))
        def _():
            acc_ref[...] += class_sum(em)
    else:
        acc_ref[...] += class_sum(em)

    @pl.when(s == inner_steps - 1)
    def _():
        out_ref[...] = (jnp.sum(acc_ref[...]) * jnp.float32(-_INV_LN2)
                        ).reshape(1, 1, 1, 1)


def _chip_budgets():
    """(target_block_bytes, vmem_budget_bytes) per chip generation."""
    try:
        vmem_cap = int(pltpu.get_tpu_info().vmem_capacity_bytes)
    except Exception:
        vmem_cap = 64 << 20                       # unknown -> be conservative
    if vmem_cap <= (64 << 20):
        # v7x-class: 64 MiB/TC and the kernel is compute-bound there -> ~4 MiB blocks.
        return 4 << 20, 20 << 20
    # v5e / v6e: 128 MiB physical VMEM; bigger blocks amortize the per-step overhead.
    return 8 << 20, 40 << 20


def _sublane_pad(c, itemsize):
    mult = max(8, 32 // max(1, itemsize))         # 8 for f32, 16 for bf16, 32 for fp8
    return ((c + mult - 1) // mult) * mult


def _choose_ts(C, HW, itemsize, requested=None):
    """Lane-dense spatial tile size (multiple of 128) sized against the VMEM budget."""
    target_block_bytes, vmem_budget = _chip_budgets()
    hw_pad = pl.cdiv(HW, 128) * 128
    if requested is None:
        ts = max(128, target_block_bytes // (C * itemsize))
    else:
        ts = int(requested)
    # Per-lane VMEM: double-buffered input (sublane-padded) + (1, ts) f32 accumulator
    # (which pads to 8 sublanes in VMEM).
    per_lane = 2 * _sublane_pad(C, itemsize) * itemsize + 32
    ts = min(ts, max(128, vmem_budget // per_lane))
    ts = max(128, (ts // 128) * 128)
    return int(min(ts, hw_pad))


def entropy_minimize_loss(x, reduction="mean", apply_nonlin=True, eps=1e-7, ts=None):
    """x: (N, C, *spatial) logits (any float dtype). Matches EntropyMinimizeLoss.forward."""
    shp = x.shape
    N, C = int(shp[0]), int(shp[1])
    HW = int(np.prod(shp[2:])) if len(shp) > 2 else 1
    x3 = x.reshape(N, C, HW)      # free reshape of the native NCHW layout (no transpose)

    # TODO(synk): for classification-shaped inputs (HW << 128), pack several batch rows
    # into the 128-lane axis instead of one (1, C, ts) block per row (lane utilization).

    itemsize = x.dtype.itemsize
    ts = _choose_ts(C, HW, itemsize, requested=ts)
    n_tiles = pl.cdiv(HW, ts)
    # Split HW into 2 "parallel" super-chunks when N == 1 so the v7x megacore has work;
    # a no-op (n_chunks == 1) otherwise and on single-TC v5e/v6e.
    n_chunks = 2 if (N == 1 and n_tiles >= 2 and n_tiles % 2 == 0) else 1
    inner_steps = n_tiles // n_chunks

    # MXU class-sum only pays off for large C; uses default matmul precision (may round
    # reduce operands to bf16 on older MXUs -- ample precision for a scalar loss).
    use_mxu = bool(apply_nonlin) and C >= 128

    block_bytes = _sublane_pad(C, itemsize) * ts * itemsize
    vmem_limit = max(2 * block_bytes + 8 * ts * 4 + (4 << 20), 32 << 20)

    kernel = functools.partial(
        _em_kernel, ts=ts, hw_total=HW, n_tiles=n_tiles, n_chunks=n_chunks,
        inner_steps=inner_steps, eps=eps, apply_nonlin=apply_nonlin, use_mxu=use_mxu)

    partial_sums = pl.pallas_call(
        kernel,
        out_shape=jax.ShapeDtypeStruct((N, n_chunks, 1, 1), jnp.float32),
        grid_spec=pltpu.PrefetchScalarGridSpec(
            num_scalar_prefetch=0,
            grid=(N, n_chunks, inner_steps),
            in_specs=[pl.BlockSpec(
                (1, C, ts),
                lambda n, c, s, _inner=inner_steps: (n, 0, c * _inner + s))],
            out_specs=pl.BlockSpec((1, 1, 1, 1), lambda n, c, s: (n, c, 0, 0)),
            scratch_shapes=[pltpu.VMEM((1, ts), jnp.float32)],
        ),
        compiler_params=pltpu.CompilerParams(
            dimension_semantics=("parallel", "parallel", "arbitrary"),
            vmem_limit_bytes=int(vmem_limit)),
    )(x3)

    total = jnp.sum(partial_sums)
    if reduction == "mean":
        return total / (N * C * HW)
    elif reduction == "sum":
        return total
    elif reduction == "none":
        # TODO(synk): reduction='none' needs a per-position (N, *spatial) output kernel.
        raise NotImplementedError("reduction='none' not implemented in the Pallas kernel")
    else:
        raise ValueError("Invalid reduction mode")


def _reference(x, reduction="mean", apply_nonlin=True, eps=1e-7):
    """Pure-JAX reference matching the PyTorch module semantics."""
    xf = x.astype(jnp.float32)
    p = jax.nn.softmax(xf, axis=1) if apply_nonlin else xf
    em = -p * (jnp.log(jnp.maximum(p, eps)) * _INV_LN2)
    if reduction == "mean":
        return jnp.mean(em)
    elif reduction == "sum":
        return jnp.sum(em)
    raise ValueError("Invalid reduction mode")


def _check(name, x, rtol=1e-5, atol=1e-6, **kw):
    ref_kw = {k: v for k, v in kw.items() if k != "ts"}
    out = jax.block_until_ready(entropy_minimize_loss(x, **kw))
    ref = jax.block_until_ready(_reference(x, **ref_kw))
    assert np.isclose(np.asarray(out, dtype=np.float64),
                      np.asarray(ref, dtype=np.float64),
                      rtol=rtol, atol=atol), (name, float(out), float(ref))


if __name__ == "__main__":
    key = jax.random.PRNGKey(0)
    ks = jax.random.split(key, 8)

    # 1) Basic segmentation-shaped case (HW multiple of 128).
    _check("basic", jax.random.normal(ks[0], (2, 4, 16, 16), jnp.float32))
    # 2) Partial last tile (HW = 100) -> exercises the last-step mask branch.
    _check("partial_tile", jax.random.normal(ks[1], (2, 4, 10, 10), jnp.float32))
    # 3) N == 1 with an explicit small ts -> exercises the megacore chunk split + mask.
    _check("megacore_chunks", jax.random.normal(ks[2], (1, 4, 30, 30), jnp.float32), ts=512)
    # 4) Large C -> exercises the MXU class-sum path (loose tol: MXU default precision
    #    may round reduce operands to bf16 on some chips).
    _check("mxu_class_sum", jax.random.normal(ks[3], (1, 128, 16, 16), jnp.float32),
           rtol=5e-3, atol=1e-5)
    # 5) C not a multiple of the sublane packing + partial HW tile.
    _check("odd_classes", jax.random.normal(ks[4], (2, 5, 12, 12), jnp.float32))
    # 6) apply_nonlin=False branch.
    _check("no_nonlin", jax.random.normal(ks[5], (2, 4, 10, 10), jnp.float32),
           apply_nonlin=False)
    # 7) reduction='sum'.
    _check("sum_reduction", jax.random.normal(ks[6], (2, 4, 16, 16), jnp.float32),
           reduction="sum")
    # 8) bf16 input (native-dtype DMA, f32 compute in-kernel).
    _check("bf16_input", jax.random.normal(ks[7], (2, 4, 16, 16), jnp.bfloat16),
           rtol=1e-4, atol=1e-5)

    print("KERNEL_OK")
</pallas_src>

<mosaic_0001>
module attributes {stable_mosaic.version = 11 : i64} {
  func.func @_em_kernel(%arg0: i32, %arg1: i32, %arg2: i32, %arg3: memref<1x4x256xf32, #tpu.memory_space<vmem>>, %arg4: memref<1x1x1x1xf32, #tpu.memory_space<vmem>>, %arg5: memref<1x256xf32, #tpu.memory_space<vmem>>) attributes {dimension_semantics = [#tpu.dimension_semantics<parallel>, #tpu.dimension_semantics<parallel>, #tpu.dimension_semantics<arbitrary>], iteration_bounds = array<i64: 2, 1, 1>, scalar_prefetch = 0 : i64, scratch_operands = 1 : i64, tpu.core_type = #tpu.core_type<tc>, window_params = [{transform_indices = @transform_0, window_bounds = array<i64: 1, 4, 256>}, {transform_indices = @transform_1, window_bounds = array<i64: 1, 1, 1, 1>}]} {
    %c0_i32 = arith.constant 0 : i32
    %0 = arith.cmpi eq, %arg2, %c0_i32 : i32
    %1 = arith.extui %0 : i1 to i32
    %c0_i32_0 = arith.constant 0 : i32
    %2 = arith.cmpi ne, %1, %c0_i32_0 : i32
    scf.if %2 {
      %cst_13 = arith.constant 0.000000e+00 : f32
      %31 = vector.broadcast %cst_13 : f32 to vector<1x256xf32>
      %c0_14 = arith.constant 0 : index
      %c0_15 = arith.constant 0 : index
      %32 = vector.load %arg5[%c0_14, %c0_15] : memref<1x256xf32, #tpu.memory_space<vmem>>, vector<1x256xf32>
      tpu.vector_store %arg5[%c0_14, %c0_15], %31 {strides = array<i32>} : memref<1x256xf32, #tpu.memory_space<vmem>>, vector<1x256xf32>,
    } else {
    }
    %c0 = arith.constant 0 : index
    %c0_1 = arith.constant 0 : index
    %c0_2 = arith.constant 0 : index
    %3 = vector.load %arg3[%c0, %c0_1, %c0_2] : memref<1x4x256xf32, #tpu.memory_space<vmem>>, vector<1x4x256xf32>
    %4 = vector.shape_cast %3 : vector<1x4x256xf32> to vector<4x256xf32>
    %cst = arith.constant dense<0xFF800000> : vector<256xf32>
    %5 = vector.multi_reduction <maximumf>, %4, %cst [0] : vector<4x256xf32> to vector<256xf32>
    %6 = vector.shape_cast %5 : vector<256xf32> to vector<1x256xf32>
    %7 = vector.broadcast %6 : vector<1x256xf32> to vector<4x256xf32>
    %8 = arith.subf %4, %7 : vector<4x256xf32>
    %9 = math.exp %8 : vector<4x256xf32>
    %cst_3 = arith.constant dense<0.000000e+00> : vector<256xf32>
    %10 = vector.multi_reduction <add>, %9, %cst_3 [0] : vector<4x256xf32> to vector<256xf32>
    %11 = vector.shape_cast %10 : vector<256xf32> to vector<1x256xf32>
    %12 = math.log %11 : vector<1x256xf32>
    %13 = arith.addf %6, %12 : vector<1x256xf32>
    %cst_4 = arith.constant 1.000000e+00 : f32
    %14 = vector.broadcast %cst_4 : f32 to vector<1x256xf32>
    %15 = arith.divf %14, %11 : vector<1x256xf32>
    %16 = vector.broadcast %15 : vector<1x256xf32> to vector<4x256xf32>
    %17 = arith.mulf %9, %16 : vector<4x256xf32>
    %18 = vector.broadcast %13 : vector<1x256xf32> to vector<4x256xf32>
    %19 = arith.subf %4, %18 : vector<4x256xf32>
    %cst_5 = arith.constant -16.1180954 : f32
    %20 = vector.broadcast %cst_5 : f32 to vector<4x256xf32>
    %21 = arith.maximumf %19, %20 : vector<4x256xf32>
    %22 = arith.mulf %17, %21 : vector<4x256xf32>
    %c0_6 = arith.constant 0 : index
    %c0_7 = arith.constant 0 : index
    %23 = vector.load %arg5[%c0_6, %c0_7] : memref<1x256xf32, #tpu.memory_space<vmem>>, vector<1x256xf32>
    %cst_8 = arith.constant dense<0.000000e+00> : vector<256xf32>
    %24 = vector.multi_reduction <add>, %22, %cst_8 [0] : vector<4x256xf32> to vector<256xf32>
    %25 = vector.shape_cast %24 : vector<256xf32> to vector<1x256xf32>
    %26 = arith.addf %23, %25 : vector<1x256xf32>
    %c0_9 = arith.constant 0 : index
    %c0_10 = arith.constant 0 : index
    %27 = vector.load %arg5[%c0_9, %c0_10] : memref<1x256xf32, #tpu.memory_space<vmem>>, vector<1x256xf32>
    tpu.vector_store %arg5[%c0_9, %c0_10], %26 {strides = array<i32>} : memref<1x256xf32, #tpu.memory_space<vmem>>, vector<1x256xf32>,
    %c0_i32_11 = arith.constant 0 : i32
    %28 = arith.cmpi eq, %arg2, %c0_i32_11 : i32
    %29 = arith.extui %28 : i1 to i32
    %c0_i32_12 = arith.constant 0 : i32
    %30 = arith.cmpi ne, %29, %c0_i32_12 : i32
    scf.if %30 {
      %c0_13 = arith.constant 0 : index
      %c0_14 = arith.constant 0 : index
      %31 = vector.load %arg5[%c0_13, %c0_14] : memref<1x256xf32, #tpu.memory_space<vmem>>, vector<1x256xf32>
      %32 = vector.shape_cast %31 : vector<1x256xf32> to vector<1x1x256xf32>
      %cst_15 = arith.constant dense<0.000000e+00> : vector<1xf32>
      %33 = vector.multi_reduction <add>, %32, %cst_15 [1, 2] : vector<1x1x256xf32> to vector<1xf32>
      %34 = vector.shape_cast %33 : vector<1xf32> to vector<1x1x1xf32>
      %35 = vector.extract %34[0, 0, 0] : f32 from vector<1x1x1xf32>
      %cst_16 = arith.constant -1.44269502 : f32
      %36 = arith.mulf %35, %cst_16 : f32
      %37 = vector.broadcast %36 : f32 to vector<1x1x1x1xf32>
      %c0_17 = arith.constant 0 : index
      %c0_18 = arith.constant 0 : index
      %c0_19 = arith.constant 0 : index
      %c0_20 = arith.constant 0 : index
      %38 = vector.load %arg4[%c0_17, %c0_18, %c0_19, %c0_20] : memref<1x1x1x1xf32, #tpu.memory_space<vmem>>, vector<1x1x1x1xf32>
      tpu.vector_store %arg4[%c0_17, %c0_18, %c0_19, %c0_20], %37 {strides = array<i32>} : memref<1x1x1x1xf32, #tpu.memory_space<vmem>>, vector<1x1x1x1xf32>,
    } else {
    }
    return
  }
  func.func @transform_0(%arg0: i32, %arg1: i32, %arg2: i32) -> (i32, i32, i32) {
    %c1_i32 = arith.constant 1 : i32
    %0 = arith.muli %arg1, %c1_i32 : i32
    %1 = arith.addi %0, %arg2 : i32
    %c0_i32 = arith.constant 0 : i32
    %c0_i32_0 = arith.constant 0 : i32
    return %arg0, %c0_i32, %1 : i32, i32, i32
  }
  func.func @transform_1(%arg0: i32, %arg1: i32, %arg2: i32) -> (i32, i32, i32, i32) {
    %c0_i32 = arith.constant 0 : i32
    %c0_i32_0 = arith.constant 0 : i32
    %c0_i32_1 = arith.constant 0 : i32
    return %arg0, %arg1, %c0_i32, %c0_i32_0 : i32, i32, i32, i32
  }
}

</mosaic_0001>

<llo_original>
// kernel: tpu_custom_call.1
$region0: #{tpu_custom_call.1}
  #allocation0 [shape = 'u32[]', space=smem, size = 0x4, offset = 0x4, fixed_abs, tag = 'smem constant byte address 0x4 - core index']
  #allocation1 [shape = 'u32[144,128]{1,0:T(1,128)}', space=vmem, size = 0x12000, scoped, tag = 'internal scratch']
  #allocation2 [shape = 'f32[1,256]{1,0:T(1,128)}', space=vmem, size = 0x400, scoped, tag = 'scratch operand']
  %s0 = inlined_call_operand.hbm [shape: f32[2,4,256], index: 0, kind: input, shape index: {}]
  %s1 = inlined_call_operand.vmem [shape: f32[2,1,1,1], index: 1, kind: output, shape index: {}]
  %s2 = sld [smem:[#allocation0]]
  $region49: #{tpu_custom_call.1} parent=0
    _
  %s4 = ssub.s32 1, %s2
  %s5 = scalar_select 0, %s4, %s2
  $region1: #{tpu_custom_call.1} parent=0
    #allocation3 [shape = 'u8[8192]{0}', space=vmem, size = 0x2000, scoped, tag = 'input window, operand 0']
    #allocation4 [shape = 's32[2]{0}', space=sflag, size = 0x8, scoped, tag = 'scoped memory for tpu_custom_call.1']
    %6 = vsyncpa [#allocation4], 0
    %s7 = scalar_lea.sflag [#allocation4], 1
    %8 = vsyncpa %s7, 0
    loop: start=0, step=1, limit=4
    $region2: #{tpu_custom_call.1} parent=1 // loop_pre_header
      _
    $region3: #{tpu_custom_call.1} parent=1 // loop_header
      %s10 = sphi 0, %s14
      %p11 = scmp.ge.s32.totalorder %s10, 4
      %s17 = sphi 0, %s36
      %s18 = sphi 0, %s32
      %s19 = sphi 0, %s28
      %s20 = sphi 0, %s17
      %s21 = sphi 0, %s18
      %s22 = sphi 0, %s19
      %s23 = sphi 0, %s20
      %s24 = sphi 0, %s21
      %s25 = sphi 0, %s22
      %s43 = sphi 0, %s45
      %s46 = sphi 0, %s43
      %s47 = sphi 0, %s46
      %s63 = sphi 0, %s47
      %s71 = sphi 0, %s73
      %s74 = sphi 0, %s71
      %s75 = sphi 0, %s74
      %s91 = sphi 0, %s75
    $region4: #{tpu_custom_call.1} parent=1 // loop_header_branch
      %13 = sbr.rel (%p11) target = $region8
    $region5: #{tpu_custom_call.1} parent=1 // loop_body
      %s15 = ssub.s32 %s10, 1
      %s16 = ssub.s32 %s10, 2
      %s26 = sadd.s32 1, %s19
      %p27 = scmp.ge.s32.totalorder %s26, 1
      %s28 = scalar_select %p27, 0, %s26
      %s29 = sadd.s32 1, %s18
      %s30 = scalar_select %p27, %s29, %s18
      %p31 = scmp.ge.s32.totalorder %s30, 1
      %s32 = scalar_select %p31, 0, %s30
      %s33 = sadd.s32 1, %s17
      %s34 = scalar_select %p31, %s33, %s17
      %p35 = scmp.ge.s32.totalorder %s34, 2
      %s36 = scalar_select %p35, 0, %s34
      %s37 = sadd.s32 %s18, %s19
      %s38 = sadd.s32 %s32, %s28
      %s39 = ssub.s32 %s17, %s36
      %s40 = ssub.s32 %s37, %s38
      %s41 = sor.u32 %s39, %s40
      %p42 = scmp.eq.s32.totalorder %s41, 0
      %s44 = sadd.s32 %s43, 1
      %s45 = scalar_select %p42, %s43, %s44
      %p48 = pneg %p42
      %p49 = scmp.eq.s32.totalorder %s10, 1
      %p50 = por %p48, %p49
      %p51 = scmp.ne.s32.totalorder %s43, %s46
      %p52 = scmp.eq.s32.totalorder %s10, 0
      %p53 = por %p51, %p52
      %p54 = scmp.ne.s32.totalorder %s43, %s46
      %p55 = scmp.eq.s32.totalorder %s15, 1
      %p56 = por %p54, %p55
      %p57 = scmp.ne.s32.totalorder %s46, %s47
      %p58 = scmp.eq.s32.totalorder %s15, 0
      %p59 = por %p57, %p58
      %p60 = scmp.ne.s32.totalorder %s46, %s47
      %p61 = scmp.eq.s32.totalorder %s16, 1
      %p62 = por %p60, %p61
      %p64 = scmp.ne.s32.totalorder %s47, %s63
      %p65 = scmp.eq.s32.totalorder %s16, 0
      %p66 = por %p64, %p65
      %s67 = ssub.s32 %s17, %s36
      %s68 = ssub.s32 %s18, %s32
      %s69 = sor.u32 %s67, %s68
      %p70 = scmp.eq.s32.totalorder %s69, 0
      %s72 = sadd.s32 %s71, 1
      %s73 = scalar_select %p70, %s71, %s72
      %p76 = pneg %p70
      %p77 = scmp.eq.s32.totalorder %s10, 1
      %p78 = por %p76, %p77
      %p79 = scmp.ne.s32.totalorder %s71, %s74
      %p80 = scmp.eq.s32.totalorder %s10, 0
      %p81 = por %p79, %p80
      %p82 = scmp.ne.s32.totalorder %s71, %s74
      %p83 = scmp.eq.s32.totalorder %s15, 1
      %p84 = por %p82, %p83
      %p85 = scmp.ne.s32.totalorder %s74, %s75
      %p86 = scmp.eq.s32.totalorder %s15, 0
      %p87 = por %p85, %p86
      %p88 = scmp.ne.s32.totalorder %s74, %s75
      %p89 = scmp.eq.s32.totalorder %s16, 1
      %p90 = por %p88, %p89
      %p92 = scmp.ne.s32.totalorder %s75, %s91
      %p93 = scmp.eq.s32.totalorder %s16, 0
      %p94 = por %p92, %p93
      %p95 = scmp.le.s32.totalorder 1, %s10
      %p96 = scmp.lt.s32.totalorder %s10, 3
      %p97 = pnand %p95, %p96
      %p98 = pneg %p97
      // Predicated region
      $region9: #{tpu_custom_call.1} parent=5 // pred_check
        _
      $region10: #{tpu_custom_call.1} parent=5 // pred_check_branch
        %100 = sbr.rel (%p97) target = $region12
      $region11: #{tpu_custom_call.1} parent=5 // pred_region
        %s101 = ssub.s32 %s10, 1
      $region12: #{tpu_custom_call.1} parent=5 // pred_fallthru
        _
      %p102 = scmp.lt.s32.totalorder %s10, 2
      // Predicated region
      $region13: #{tpu_custom_call.1} parent=5 // pred_check
        %p103 = pneg %p102
      $region14: #{tpu_custom_call.1} parent=5 // pred_check_branch
        %105 = sbr.rel (%p103) target = $region16
      $region15: #{tpu_custom_call.1} parent=5 // pred_region
        // Predicated region
        $region17: #{tpu_custom_call.1} parent=15 // pred_check
          %p106 = pneg %p53
        $region18: #{tpu_custom_call.1} parent=15 // pred_check_branch
          %108 = sbr.rel (%p106) target = $region20
        $region19: #{tpu_custom_call.1} parent=15 // pred_region
          %s109 = sand.u32 %s43, 1
          %s110 = scalar_lea.sflag [#allocation4], %s109
          %s111 = sand.u32 %s43, 1
          %s112 = smul.addr %s111, 8
          %s113 = scalar_lea.vmem [#allocation3], %s112
          %s114 = sadd.s32 %s18, %s19
          %s115 = smul.u32 2, %s114
          %s117 = ssub.s32 128, 128
          %118 = vsyncadd %s110, %s117
          %s119 = smul.addr %s17, 2
          %s120 = sadd.s32 %s115, %s119
          %s121 = smul.addr %s120, 64
          %s122 = scalar_lea.hbm %s0, %s121
          %s124 = sshll.u32 %s113, 4
          %s125 = int_to_ptr.vmem [resolvable:$true] %s124
          %127 = dma.hbm_to_vmem [thread:$0]  %s122, 128, %s125, %s110
        $region20: #{tpu_custom_call.1} parent=15 // pred_fallthru
          _
      $region16: #{tpu_custom_call.1} parent=5 // pred_fallthru
        _
      %p128 = scmp.le.s32.totalorder 1, %s10
      %p129 = scmp.lt.s32.totalorder %s10, 3
      %p130 = pnand %p128, %p129
      %p131 = pneg %p130
      // Predicated region
      $region21: #{tpu_custom_call.1} parent=5 // pred_check
        _
      $region22: #{tpu_custom_call.1} parent=5 // pred_check_branch
        %133 = sbr.rel (%p130) target = $region24
      $region23: #{tpu_custom_call.1} parent=5 // pred_region
        %s134 = ssub.s32 %s10, 1
        %s135 = sand.u32 %s46, 1
        %s136 = scalar_lea.sflag [#allocation4], %s135
        %s137 = sand.u32 %s46, 1
        %s138 = smul.addr %s137, 8
        %s139 = scalar_lea.vmem [#allocation3], %s138
        // Predicated region
        $region25: #{tpu_custom_call.1} parent=23 // pred_check
          %p140 = pneg %p59
        $region26: #{tpu_custom_call.1} parent=23 // pred_check_branch
          %142 = sbr.rel (%p140) target = $region28
        $region27: #{tpu_custom_call.1} parent=23 // pred_region
          %143 = dma.done %s136, 128
        $region28: #{tpu_custom_call.1} parent=23 // pred_fallthru
          _
        %s144 = sand.u32 %s46, 1
        %s145 = scalar_lea.sflag [#allocation4], %s144
        %s146 = sand.u32 %s46, 1
        %s147 = smul.addr %s146, 8
        %s148 = scalar_lea.vmem [#allocation3], %s147
        %p149 = pneg %p59
        %p150 = pneg %p56
        %p151 = pneg %p87
        %p152 = pneg %p84
        %p153 = scmp.lt.s32.totalorder %s20, 1
        %s154 = scalar_select %p153, %s20, 1
        %p155 = scmp.lt.s32.totalorder %s21, 0
        %s156 = scalar_select %p155, %s21, 0
        %s157 = sadd.s32 %s156, %s154
        %s158 = scalar_lea.vmem %s1, %s157
        %s159 = sadd.s32 %s21, %s22
        %s160 = smul.u32 2, %s159
        %p161 = scmp.lt.s32.totalorder %s20, 1
        %s162 = scalar_select %p161, %s20, 1
        %p163 = scmp.lt.s32.totalorder %s21, 0
        %s164 = scalar_select %p163, %s21, 0
        %s165 = sadd.s32 %s164, %s162
        %s166 = scalar_lea.vmem %s1, %s165
        %p167 = scmp.eq.s32.totalorder %s22, 0
        // Predicated region
        $region29: #{tpu_custom_call.1} parent=23 // pred_check
          %p168 = pneg %p167
        $region30: #{tpu_custom_call.1} parent=23 // pred_check_branch
          %170 = sbr.rel (%p168) target = $region32
        $region31: #{tpu_custom_call.1} parent=23 // pred_region
          %v171 = vlaneseq
          %vm172 = vcmp.ge.s32.totalorder %v171, 0
          %vm173 = vcmp.lt.s32.totalorder %v171, 256
          %vm174 = vmand %vm172, %vm173
          %175 = vst.msk [vmem:[#allocation2] sm:$0x3] %vm174, 0.0
        $region32: #{tpu_custom_call.1} parent=23 // pred_fallthru
          _
        %v176 = vld [vmem:[%s139] sm:$0xff]
        %v178 = vcombine.high %v176, %v176
        %vm180 = vcmask 1043456
        %v181 = vsel %vm180, %v176, -inf
        %v182 = vrot.slane %v181, 4
        %v183 = vmax.f32 %v181, %v182
        %v184 = vrot.slane %v183, 2
        %v185 = vmax.f32 %v183, %v184
        %v186 = vrot.slane %v185, 1
        %v187 = vmax.f32 %v185, %v186
        %v188 = vsel %vm180, %v178, -inf
        %v189 = vrot.slane %v188, 4
        %v190 = vmax.f32 %v188, %v189
        %v191 = vrot.slane %v190, 2
        %v192 = vmax.f32 %v190, %v191
        %v193 = vrot.slane %v192, 1
        %v194 = vmax.f32 %v192, %v193
        %v197 = vcombine.low %v187, %v194
        %v199 = vsub.f32 %v176, %v197
        %v200 = vmul.f32 %v199, 1.442695
        %v201 = vpow.pop %v200
        %v203 = vcombine.high %v201, %v201
        %v205 = vsel %vm180, %v201, 0.0
        %v206 = vrot.slane %v205, 4
        %v207 = vadd.f32 %v205, %v206
        %v208 = vrot.slane %v207, 2
        %v209 = vadd.f32 %v207, %v208
        %v210 = vrot.slane %v209, 1
        %v211 = vadd.f32 %v209, %v210
        %v212 = vsel %vm180, %v203, 0.0
        %v213 = vrot.slane %v212, 4
        %v214 = vadd.f32 %v212, %v213
        %v215 = vrot.slane %v214, 2
        %v216 = vadd.f32 %v214, %v215
        %v217 = vrot.slane %v216, 1
        %v218 = vadd.f32 %v216, %v217
        %v219 = vlog2.pop %v211
        %v220 = vmul.f32 %v219, 0.6931472
        %v221 = vlog2.pop %v218
        %v222 = vmul.f32 %v221, 0.6931472
        %v223 = vadd.f32 %v187, %v220
        %v224 = vadd.f32 %v194, %v222
        %v225 = vrcp.pop %v211
        %v226 = vmul.f32 1.0, %v225
        %v227 = vrcp.pop %v218
        %v228 = vmul.f32 1.0, %v227
        %v231 = vcombine.low %v226, %v228
        %v233 = vmul.f32 %v201, %v231
        %v236 = vcombine.low %v223, %v224
        %v238 = vsub.f32 %v176, %v236
        %v239 = vmax.f32 %v238, -16.118095
        %v240 = vmul.f32 %v233, %v239
        %v241 = vld [vmem:[#allocation2] sm:$0x3]
        %v243 = vcombine.high %v240, %v240
        %v245 = vsel %vm180, %v240, 0.0
        %v246 = vrot.slane %v245, 4
        %v247 = vadd.f32 %v245, %v246
        %v248 = vrot.slane %v247, 2
        %v249 = vadd.f32 %v247, %v248
        %v250 = vrot.slane %v249, 1
        %v251 = vadd.f32 %v249, %v250
        %v252 = vsel %vm180, %v243, 0.0
        %v253 = vrot.slane %v252, 4
        %v254 = vadd.f32 %v252, %v253
        %v255 = vrot.slane %v254, 2
        %v256 = vadd.f32 %v254, %v255
        %v257 = vrot.slane %v256, 1
        %v258 = vadd.f32 %v256, %v257
        %v261 = vcombine.low %v251, %v258
        %v263 = vunpack.c.l.s4 1966171168
        %v264 = vunpack.c.0.s8 %v263
        %v265 = vlaneseq
        %v266 = vshrl.u32 %v265, 7
        %v267 = vsub.s32 %v264, %v266
        %v268 = vrot.slane %v261, %v267
        %v270 = vunpack.c.l.s4 1966171168
        %v271 = vunpack.c.0.s8 %v270
        %v272 = vlaneseq
        %v273 = vshrl.u32 %v272, 7
        %v274 = vsub.s32 %v271, %v273
        %v275 = vrot.slane %v268, %v274
        %v277 = vadd.f32 %v241, %v275
        %v278 = vlaneseq
        %vm279 = vcmp.ge.s32.totalorder %v278, 0
        %vm280 = vcmp.lt.s32.totalorder %v278, 256
        %vm281 = vmand %vm279, %vm280
        %282 = vst.msk [vmem:[#allocation2] sm:$0x3] %vm281, %v277
        // Predicated region
        $region33: #{tpu_custom_call.1} parent=23 // pred_check
          %p283 = pneg %p167
        $region34: #{tpu_custom_call.1} parent=23 // pred_check_branch
          %285 = sbr.rel (%p283) target = $region36
        $region35: #{tpu_custom_call.1} parent=23 // pred_region
          %v286 = vld [vmem:[#allocation2] sm:$0x3]
          %v288 = vlaneseq
          %v289 = vshrl.u32 %v288, 7
          %v290 = vsub.s32 0, %v289
          %v291 = vrot.slane %v286, %v290
          %v292 = vlaneseq
          %v293 = vshrl.u32 %v292, 7
          %v294 = vsub.s32 1, %v293
          %v295 = vrot.slane %v286, %v294
          %vm298 = vcmask 1040384
          %v299 = vsel %vm298, %v291, 0.0
          %v300 = vsel %vm298, %v295, 0.0
          %v301 = vadd.f32 %v299, %v300
          %302 = vadd.xlane.f32.xlu0 %v301
          %v303 = vpop.xlane.xlu0 %302
          %v304 = vrot.slane %v303, 4
          %v305 = vadd.f32 %v303, %v304
          %v306 = vrot.slane %v305, 2
          %v307 = vadd.f32 %v305, %v306
          %v308 = vrot.slane %v307, 1
          %v309 = vadd.f32 %v307, %v308
          %s310 = vtos %v309
          %s311 = smul.f32 %s310, -1.442695
          %v312 = vstv %s311
          %vm313 = vcmask 0
          %314 = vst.msk [vmem:[%s166] sm:$0x1] %vm313, %v312
        $region36: #{tpu_custom_call.1} parent=23 // pred_fallthru
          _
        %p315 = scmp.lt.s32.totalorder %s20, 1
        %s316 = scalar_select %p315, %s20, 1
        %p317 = scmp.lt.s32.totalorder %s21, 0
        %s318 = scalar_select %p317, %s21, 0
        %s319 = sadd.s32 %s318, %s316
        %s320 = scalar_lea.vmem %s1, %s319
        // Predicated region
        $region37: #{tpu_custom_call.1} parent=23 // pred_check
          %p321 = pneg %p84
        $region38: #{tpu_custom_call.1} parent=23 // pred_check_branch
          %323 = sbr.rel (%p321) target = $region40
        $region39: #{tpu_custom_call.1} parent=23 // pred_region
          _
        $region40: #{tpu_custom_call.1} parent=23 // pred_fallthru
          _
      $region24: #{tpu_custom_call.1} parent=5 // pred_fallthru
        _
      %p324 = scmp.le.s32.totalorder 2, %s10
      // Predicated region
      $region41: #{tpu_custom_call.1} parent=5 // pred_check
        %p325 = pneg %p324
      $region42: #{tpu_custom_call.1} parent=5 // pred_check_branch
        %327 = sbr.rel (%p325) target = $region44
      $region43: #{tpu_custom_call.1} parent=5 // pred_region
        %s328 = ssub.s32 %s10, 2
        // Predicated region
        $region45: #{tpu_custom_call.1} parent=43 // pred_check
          %p329 = pneg %p90
        $region46: #{tpu_custom_call.1} parent=43 // pred_check_branch
          %331 = sbr.rel (%p329) target = $region48
        $region47: #{tpu_custom_call.1} parent=43 // pred_region
          %p332 = scmp.lt.s32.totalorder %s23, 1
          %s333 = scalar_select %p332, %s23, 1
          %p334 = scmp.lt.s32.totalorder %s24, 0
          %s335 = scalar_select %p334, %s24, 0
          %s336 = sadd.s32 %s335, %s333
          %s337 = scalar_lea.vmem %s1, %s336
        $region48: #{tpu_custom_call.1} parent=43 // pred_fallthru
          _
      $region44: #{tpu_custom_call.1} parent=5 // pred_fallthru
        _
    $region6: #{tpu_custom_call.1} parent=1 // loop_footer
      %s14 = sadd.s32 1, %s10
    $region7: #{tpu_custom_call.1} parent=1 // loop_footer_branch
      %9 = sbr.rel target = $region3
    $region8: #{tpu_custom_call.1} parent=1 // loop_exit
      _
    %338 = vsyncpa [#allocation4], 1
    %s339 = scalar_lea.sflag [#allocation4], 1
    %340 = vsyncpa %s339, 1

</llo_original>
